<compile_context>
chip_gen: v6e
topology: v6e:2x2x1
jax: 0.10.0
libtpu: 0.0.40
codegen_flags: <defaults>
</compile_context>

<pallas_src>
import jax
import jax.numpy as jnp
from jax.experimental import pallas as pl
from jax.experimental.pallas import tpu as pltpu


def _critic_kernel(x_ref, w1_ref, b1_ref, w2_ref, b2_ref, wc_ref, bc_ref, out_ref):
    neg_slope = jnp.float32(0.01)

    def lrelu(v):
        return jnp.where(v > 0, v, neg_slope * v)

    x = x_ref[...]                                     # (TB, n_state + n_action)

    # layer 1 (fused obs/action branch):  [x_o | x_a] = LReLU(x @ W1_blockdiag + b1)
    h1 = lrelu(jnp.dot(x, w1_ref[...], preferred_element_type=jnp.float32)
               + b1_ref[...])                          # (TB, 2H)

    # layer 2: LReLU(cat([x_o, x_a]) @ W2 + b2)
    h2 = lrelu(jnp.dot(h1, w2_ref[...], preferred_element_type=jnp.float32)
               + b2_ref[...])                          # (TB, H)

    # value head (N=1): keep it off the MXU -> VPU multiply + XLU lane reduce.
    out_ref[...] = (jnp.sum(h2 * wc_ref[...], axis=-1, keepdims=True)
                    + bc_ref[...])                     # (TB, 1)


def critic_agent_forward(obs, action, params, *, block_b=512):
    """obs: (B, n_state), action: (B, n_action). Returns value: (B, 1) float32."""
    B = obs.shape[0]
    x = jnp.concatenate([obs.astype(jnp.float32), action.astype(jnp.float32)], axis=1)
    n_in = x.shape[1]

    w1, b1 = params["w1"], params["b1"]
    w2, b2 = params["w2"], params["b2"]
    wc, bc = params["wc"], params["bc"]

    # Batch tile: at least 8 (sublane multiple), at most block_b; pad B up to a
    # multiple of the tile so every grid step sees a full (tb, n_in) block.
    tb = block_b if B >= block_b else ((B + 7) // 8) * 8
    Bp = ((B + tb - 1) // tb) * tb
    if Bp != B:
        x = jnp.pad(x, ((0, Bp - B), (0, 0)))

    grid = (Bp // tb,)

    in_specs = [
        pl.BlockSpec((tb, n_in), lambda i: (i, 0)),        # batched input tile
        pl.BlockSpec(w1.shape, lambda i: (0, 0)),          # weights stay resident
        pl.BlockSpec(b1.shape, lambda i: (0, 0)),
        pl.BlockSpec(w2.shape, lambda i: (0, 0)),
        pl.BlockSpec(b2.shape, lambda i: (0, 0)),
        pl.BlockSpec(wc.shape, lambda i: (0, 0)),
        pl.BlockSpec(bc.shape, lambda i: (0, 0)),
    ]
    out_spec = pl.BlockSpec((tb, 1), lambda i: (i, 0))

    out = pl.pallas_call(
        _critic_kernel,
        out_shape=jax.ShapeDtypeStruct((Bp, 1), jnp.float32),
        grid=grid,
        in_specs=in_specs,
        out_specs=out_spec,
        compiler_params=pltpu.CompilerParams(
            dimension_semantics=("parallel",)),
    )(x, w1, b1, w2, b2, wc, bc)

    return out[:B]


def init_raw_params(key, n_state, n_action, n_hidden):
    """Per-layer params mimicking nn.Linear default init U[-1/sqrt(in), 1/sqrt(in)]
    with weights scaled by calculate_gain('leaky_relu'), as in reset_parameters().
    Weights are stored transposed, i.e. (in_features, out_features)."""
    gain = jnp.sqrt(2.0 / (1.0 + 0.01 ** 2)).astype(jnp.float32)

    def linear(key, fan_in, fan_out):
        kw, kb = jax.random.split(key)
        bound = 1.0 / jnp.sqrt(jnp.float32(fan_in))
        w = jax.random.uniform(kw, (fan_in, fan_out), jnp.float32, -bound, bound) * gain
        b = jax.random.uniform(kb, (1, fan_out), jnp.float32, -bound, bound)
        return w, b

    k1, k2, k3, k4 = jax.random.split(key, 4)
    w1o, b1o = linear(k1, n_state, n_hidden)        # linear_o_c1
    w1a, b1a = linear(k2, n_action, n_hidden)       # linear_a_c1
    w2, b2 = linear(k3, 2 * n_hidden, n_hidden)     # linear_c2
    wc, bc = linear(k4, n_hidden, 1)                # linear_c
    return {"w1o": w1o, "b1o": b1o, "w1a": w1a, "b1a": b1a,
            "w2": w2, "b2": b2, "wc": wc, "bc": bc}


def pack_params(raw, n_state, n_action, n_hidden):
    """Pack per-layer params into the fused layout used by the kernel."""
    n_in = n_state + n_action
    w1 = jnp.zeros((n_in, 2 * n_hidden), jnp.float32)
    w1 = w1.at[:n_state, :n_hidden].set(raw["w1o"])
    w1 = w1.at[n_state:, n_hidden:].set(raw["w1a"])
    b1 = jnp.concatenate([raw["b1o"], raw["b1a"]], axis=1)       # (1, 2H)
    wc_row = raw["wc"].reshape(1, n_hidden)                      # (1, H) for VPU head
    bc = raw["bc"].reshape(1, 1)
    # NOTE: for large-batch v6e/v7x use, weights could be stored bf16 (dots keep
    # preferred_element_type=f32); kept f32 here for exact reference comparison.
    return {"w1": w1, "b1": b1, "w2": raw["w2"], "b2": raw["b2"],
            "wc": wc_row, "bc": bc}


def _reference_forward(obs, action, raw):
    """Mirrors the PyTorch critic_agent.forward exactly (with (in,out) weights)."""
    def lrelu(v):
        return jnp.where(v > 0, v, 0.01 * v)
    x_o = lrelu(obs @ raw["w1o"] + raw["b1o"])
    x_a = lrelu(action @ raw["w1a"] + raw["b1a"])
    x_cat = jnp.concatenate([x_o, x_a], axis=1)
    x = lrelu(x_cat @ raw["w2"] + raw["b2"])
    return x @ raw["wc"] + raw["bc"]


if __name__ == "__main__":
    key = jax.random.PRNGKey(0)
    k_obs, k_act, k_param, k_obs2, k_act2 = jax.random.split(key, 5)

    n_state, n_action, n_hidden = 16, 8, 32
    raw = init_raw_params(k_param, n_state, n_action, n_hidden)
    params = pack_params(raw, n_state, n_action, n_hidden)

    # --- small-batch check (single grid step) ---
    B = 8
    obs = jax.random.normal(k_obs, (B, n_state), jnp.float32)
    action = jax.random.normal(k_act, (B, n_action), jnp.float32)
    value = jax.block_until_ready(critic_agent_forward(obs, action, params))
    ref = _reference_forward(obs, action, raw)
    assert value.shape == (B, 1)
    assert jnp.allclose(value, ref, atol=1e-5, rtol=1e-5)

    # --- batched-grid check (padding + multiple grid steps, parallel axis) ---
    B2 = 300
    obs2 = jax.random.normal(k_obs2, (B2, n_state), jnp.float32)
    action2 = jax.random.normal(k_act2, (B2, n_action), jnp.float32)
    value2 = jax.block_until_ready(
        critic_agent_forward(obs2, action2, params, block_b=128))
    ref2 = _reference_forward(obs2, action2, raw)
    assert value2.shape == (B2, 1)
    assert jnp.allclose(value2, ref2, atol=1e-5, rtol=1e-5)

    print("KERNEL_OK")
</pallas_src>

<mosaic_0001>
module attributes {stable_mosaic.version = 11 : i64} {
  func.func @_critic_kernel(%arg0: i32, %arg1: memref<8x24xf32, #tpu.memory_space<vmem>>, %arg2: memref<24x64xf32, #tpu.memory_space<vmem>>, %arg3: memref<1x64xf32, #tpu.memory_space<vmem>>, %arg4: memref<64x32xf32, #tpu.memory_space<vmem>>, %arg5: memref<1x32xf32, #tpu.memory_space<vmem>>, %arg6: memref<1x32xf32, #tpu.memory_space<vmem>>, %arg7: memref<1x1xf32, #tpu.memory_space<vmem>>, %arg8: memref<8x1xf32, #tpu.memory_space<vmem>>) attributes {dimension_semantics = [#tpu.dimension_semantics<parallel>], iteration_bounds = array<i64: 1>, scalar_prefetch = 0 : i64, scratch_operands = 0 : i64, tpu.core_type = #tpu.core_type<tc>, window_params = [{transform_indices = @transform_0, window_bounds = array<i64: 8, 24>}, {pipeline_mode = #tpu.pipeline_mode<synchronous>, transform_indices = @transform_1, window_bounds = array<i64: 24, 64>}, {pipeline_mode = #tpu.pipeline_mode<synchronous>, transform_indices = @transform_2, window_bounds = array<i64: 1, 64>}, {pipeline_mode = #tpu.pipeline_mode<synchronous>, transform_indices = @transform_3, window_bounds = array<i64: 64, 32>}, {pipeline_mode = #tpu.pipeline_mode<synchronous>, transform_indices = @transform_4, window_bounds = array<i64: 1, 32>}, {pipeline_mode = #tpu.pipeline_mode<synchronous>, transform_indices = @transform_5, window_bounds = array<i64: 1, 32>}, {pipeline_mode = #tpu.pipeline_mode<synchronous>, transform_indices = @transform_6, window_bounds = array<i64: 1, 1>}, {transform_indices = @transform_7, window_bounds = array<i64: 8, 1>}]} {
    %c0 = arith.constant 0 : index
    %c0_0 = arith.constant 0 : index
    %0 = vector.load %arg1[%c0, %c0_0] : memref<8x24xf32, #tpu.memory_space<vmem>>, vector<8x24xf32>
    %c0_1 = arith.constant 0 : index
    %c0_2 = arith.constant 0 : index
    %1 = vector.load %arg2[%c0_1, %c0_2] : memref<24x64xf32, #tpu.memory_space<vmem>>, vector<24x64xf32>
    %cst = arith.constant dense<0.000000e+00> : vector<8x64xf32>
    %2 = tpu.matmul %0, %1, %cst {dimension_numbers = #tpu.dot_dimension_numbers<[1], [0], [0], [1], [0, 0, 1, 1], [], []>} : vector<8x24xf32>, vector<24x64xf32>, vector<8x64xf32> -> vector<8x64xf32>
    %c0_3 = arith.constant 0 : index
    %c0_4 = arith.constant 0 : index
    %3 = vector.load %arg3[%c0_3, %c0_4] : memref<1x64xf32, #tpu.memory_space<vmem>>, vector<1x64xf32>
    %4 = vector.broadcast %3 : vector<1x64xf32> to vector<8x64xf32>
    %5 = arith.addf %2, %4 : vector<8x64xf32>
    %cst_5 = arith.constant 0.000000e+00 : f32
    %6 = vector.broadcast %cst_5 : f32 to vector<8x64xf32>
    %7 = arith.cmpf ogt, %5, %6 : vector<8x64xf32>
    %cst_6 = arith.constant 0.00999999977 : f32
    %8 = vector.broadcast %cst_6 : f32 to vector<8x64xf32>
    %9 = arith.mulf %8, %5 : vector<8x64xf32>
    %10 = arith.select %7, %5, %9 : vector<8x64xi1>, vector<8x64xf32>
    %c0_7 = arith.constant 0 : index
    %c0_8 = arith.constant 0 : index
    %11 = vector.load %arg4[%c0_7, %c0_8] : memref<64x32xf32, #tpu.memory_space<vmem>>, vector<64x32xf32>
    %cst_9 = arith.constant dense<0.000000e+00> : vector<8x32xf32>
    %12 = tpu.matmul %10, %11, %cst_9 {dimension_numbers = #tpu.dot_dimension_numbers<[1], [0], [0], [1], [0, 0, 1, 1], [], []>} : vector<8x64xf32>, vector<64x32xf32>, vector<8x32xf32> -> vector<8x32xf32>
    %c0_10 = arith.constant 0 : index
    %c0_11 = arith.constant 0 : index
    %13 = vector.load %arg5[%c0_10, %c0_11] : memref<1x32xf32, #tpu.memory_space<vmem>>, vector<1x32xf32>
    %14 = vector.broadcast %13 : vector<1x32xf32> to vector<8x32xf32>
    %15 = arith.addf %12, %14 : vector<8x32xf32>
    %cst_12 = arith.constant 0.000000e+00 : f32
    %16 = vector.broadcast %cst_12 : f32 to vector<8x32xf32>
    %17 = arith.cmpf ogt, %15, %16 : vector<8x32xf32>
    %cst_13 = arith.constant 0.00999999977 : f32
    %18 = vector.broadcast %cst_13 : f32 to vector<8x32xf32>
    %19 = arith.mulf %18, %15 : vector<8x32xf32>
    %20 = arith.select %17, %15, %19 : vector<8x32xi1>, vector<8x32xf32>
    %c0_14 = arith.constant 0 : index
    %c0_15 = arith.constant 0 : index
    %21 = vector.load %arg6[%c0_14, %c0_15] : memref<1x32xf32, #tpu.memory_space<vmem>>, vector<1x32xf32>
    %22 = vector.broadcast %21 : vector<1x32xf32> to vector<8x32xf32>
    %23 = arith.mulf %20, %22 : vector<8x32xf32>
    %cst_16 = arith.constant dense<0.000000e+00> : vector<8xf32>
    %24 = vector.multi_reduction <add>, %23, %cst_16 [1] : vector<8x32xf32> to vector<8xf32>
    %25 = vector.shape_cast %24 : vector<8xf32> to vector<8x1xf32>
    %c0_17 = arith.constant 0 : index
    %c0_18 = arith.constant 0 : index
    %26 = vector.load %arg7[%c0_17, %c0_18] : memref<1x1xf32, #tpu.memory_space<vmem>>, vector<1x1xf32>
    %27 = vector.broadcast %26 : vector<1x1xf32> to vector<8x1xf32>
    %28 = arith.addf %25, %27 : vector<8x1xf32>
    %c0_19 = arith.constant 0 : index
    %c0_20 = arith.constant 0 : index
    %29 = vector.load %arg8[%c0_19, %c0_20] : memref<8x1xf32, #tpu.memory_space<vmem>>, vector<8x1xf32>
    tpu.vector_store %arg8[%c0_19, %c0_20], %28 {strides = array<i32>} : memref<8x1xf32, #tpu.memory_space<vmem>>, vector<8x1xf32>,
    return
  }
  func.func @transform_0(%arg0: i32) -> (i32, i32) {
    %c0_i32 = arith.constant 0 : i32
    %c0_i32_0 = arith.constant 0 : i32
    return %arg0, %c0_i32 : i32, i32
  }
  func.func @transform_1(%arg0: i32) -> (i32, i32) {
    %c0_i32 = arith.constant 0 : i32
    %c0_i32_0 = arith.constant 0 : i32
    %c0_i32_1 = arith.constant 0 : i32
    return %c0_i32, %c0_i32_0 : i32, i32
  }
  func.func @transform_2(%arg0: i32) -> (i32, i32) {
    %c0_i32 = arith.constant 0 : i32
    %c0_i32_0 = arith.constant 0 : i32
    %c0_i32_1 = arith.constant 0 : i32
    return %c0_i32, %c0_i32_0 : i32, i32
  }
  func.func @transform_3(%arg0: i32) -> (i32, i32) {
    %c0_i32 = arith.constant 0 : i32
    %c0_i32_0 = arith.constant 0 : i32
    %c0_i32_1 = arith.constant 0 : i32
    return %c0_i32, %c0_i32_0 : i32, i32
  }
  func.func @transform_4(%arg0: i32) -> (i32, i32) {
    %c0_i32 = arith.constant 0 : i32
    %c0_i32_0 = arith.constant 0 : i32
    %c0_i32_1 = arith.constant 0 : i32
    return %c0_i32, %c0_i32_0 : i32, i32
  }
  func.func @transform_5(%arg0: i32) -> (i32, i32) {
    %c0_i32 = arith.constant 0 : i32
    %c0_i32_0 = arith.constant 0 : i32
    %c0_i32_1 = arith.constant 0 : i32
    return %c0_i32, %c0_i32_0 : i32, i32
  }
  func.func @transform_6(%arg0: i32) -> (i32, i32) {
    %c0_i32 = arith.constant 0 : i32
    %c0_i32_0 = arith.constant 0 : i32
    %c0_i32_1 = arith.constant 0 : i32
    return %c0_i32, %c0_i32_0 : i32, i32
  }
  func.func @transform_7(%arg0: i32) -> (i32, i32) {
    %c0_i32 = arith.constant 0 : i32
    %c0_i32_0 = arith.constant 0 : i32
    return %arg0, %c0_i32 : i32, i32
  }
}

</mosaic_0001>

<llo_original>
// kernel: tpu_custom_call.1
$region0: #{tpu_custom_call.1}
  #allocation0 [shape = 'u32[]', space=smem, size = 0x4, offset = 0x4, fixed_abs, tag = 'smem constant byte address 0x4 - core index']
  #allocation1 [shape = 'u32[144,128]{1,0:T(1,128)}', space=vmem, size = 0x12000, scoped, tag = 'internal scratch']
  #allocation2 [shape = 'f32[1,1]{1,0:T(1,128)S(1)}', space=vmem, size = 0x200, scoped, tag = 'scoped memory for tpu_custom_call.1']
  %s0 = inlined_call_operand.vmem [shape: f32[8,24], index: 0, kind: input, shape index: {}]
  %s1 = inlined_call_operand.vmem [shape: f32[24,64], index: 1, kind: input, shape index: {}]
  %s2 = inlined_call_operand.vmem [shape: f32[1,64], index: 2, kind: input, shape index: {}]
  %s3 = inlined_call_operand.vmem [shape: f32[64,32], index: 3, kind: input, shape index: {}]
  %s4 = inlined_call_operand.vmem [shape: f32[1,32], index: 4, kind: input, shape index: {}]
  %s5 = inlined_call_operand.vmem [shape: f32[1,32], index: 5, kind: input, shape index: {}]
  %s6 = inlined_call_operand.<no memory space> [shape: f32[1,1], index: 6, kind: input, shape index: {}]
  %s7 = inlined_call_operand.vmem [shape: f32[8,1], index: 7, kind: output, shape index: {}]
  %s8 = sld [smem:[#allocation0]]
  $region38: #{tpu_custom_call.1} parent=0
    _
  %s10 = ssub.s32 1, %s8
  %s11 = scalar_select 0, %s10, %s8
  %v12 = vstv %s6
  %13 = vst [vmem:[#allocation2] sm:$0x1] %v12
  // Predicated region
  $region2: #{tpu_custom_call.1} parent=0 // pred_check
    _
  $region3: #{tpu_custom_call.1} parent=0 // pred_check_branch
    %15 = sbr.rel (0) target = $region5
  $region4: #{tpu_custom_call.1} parent=0 // pred_region
    _
  $region5: #{tpu_custom_call.1} parent=0 // pred_fallthru
    _
  // Predicated region
  $region6: #{tpu_custom_call.1} parent=0 // pred_check
    _
  $region7: #{tpu_custom_call.1} parent=0 // pred_check_branch
    %17 = sbr.rel (0) target = $region9
  $region8: #{tpu_custom_call.1} parent=0 // pred_region
    _
  $region9: #{tpu_custom_call.1} parent=0 // pred_fallthru
    _
  // Predicated region
  $region10: #{tpu_custom_call.1} parent=0 // pred_check
    _
  $region11: #{tpu_custom_call.1} parent=0 // pred_check_branch
    %19 = sbr.rel (0) target = $region13
  $region12: #{tpu_custom_call.1} parent=0 // pred_region
    _
  $region13: #{tpu_custom_call.1} parent=0 // pred_fallthru
    _
  // Predicated region
  $region14: #{tpu_custom_call.1} parent=0 // pred_check
    _
  $region15: #{tpu_custom_call.1} parent=0 // pred_check_branch
    %21 = sbr.rel (0) target = $region17
  $region16: #{tpu_custom_call.1} parent=0 // pred_region
    _
  $region17: #{tpu_custom_call.1} parent=0 // pred_fallthru
    _
  // Predicated region
  $region18: #{tpu_custom_call.1} parent=0 // pred_check
    _
  $region19: #{tpu_custom_call.1} parent=0 // pred_check_branch
    %23 = sbr.rel (0) target = $region21
  $region20: #{tpu_custom_call.1} parent=0 // pred_region
    _
  $region21: #{tpu_custom_call.1} parent=0 // pred_fallthru
    _
  // Predicated region
  $region22: #{tpu_custom_call.1} parent=0 // pred_check
    _
  $region23: #{tpu_custom_call.1} parent=0 // pred_check_branch
    %25 = sbr.rel (0) target = $region25
  $region24: #{tpu_custom_call.1} parent=0 // pred_region
    _
  $region25: #{tpu_custom_call.1} parent=0 // pred_fallthru
    _
  // Predicated region
  $region26: #{tpu_custom_call.1} parent=0 // pred_check
    _
  $region27: #{tpu_custom_call.1} parent=0 // pred_check_branch
    %27 = sbr.rel (0) target = $region29
  $region28: #{tpu_custom_call.1} parent=0 // pred_region
    _
  $region29: #{tpu_custom_call.1} parent=0 // pred_fallthru
    _
  %v28 = vld [vmem:[%s0] sm:$0xff]
  %v29 = vld [vmem:[%s1] sm:$0xff]
  %v30 = vld [vmem:[%s1 + $0x8] sm:$0xff]
  %v31 = vld [vmem:[%s1 + $0x10] sm:$0xff]
  %v32 = vld [vmem:[%s2] sm:$0x1]
  %v34 = vlaneseq
  %v35 = vshrl.u32 %v34, 7
  %v36 = vsub.s32 0, %v35
  %v37 = vrot.slane %v32, %v36
  %vm39 = vcmask 195584
  %v41 = vsel %vm39, %v28, 0
  %43 = vmatprep.subr.mxu0 0.0
  %44 = vmatpush1.msra.mxu0 0.0
  %45 = vmatprep.subr.mxu0 0.0
  %46 = vmatpush1.msra.mxu0 0.0
  %47 = vmatprep.subr.mxu0 0.0
  %48 = vmatpush1.msra.mxu0 0.0
  %49 = vmatprep.subr.mxu0 0.0
  %50 = vmatpush1.msra.mxu0 0.0
  %51 = vmatprep.subr.mxu0 0.0
  %52 = vmatpush1.msra.mxu0 0.0
  %53 = vmatprep.subr.mxu0 0.0
  %54 = vmatpush1.msra.mxu0 0.0
  %55 = vmatprep.subr.mxu0 0.0
  %56 = vmatpush1.msra.mxu0 0.0
  %57 = vmatprep.subr.mxu0 0.0
  %58 = vmatpush1.msra.mxu0 0.0
  %59 = vmatprep.subr.mxu0 0.0
  %60 = vmatpush1.msra.mxu0 0.0
  %61 = vmatprep.subr.mxu0 0.0
  %62 = vmatpush1.msra.mxu0 0.0
  %63 = vmatprep.subr.mxu0 0.0
  %64 = vmatpush1.msra.mxu0 0.0
  %65 = vmatprep.subr.mxu0 0.0
  %66 = vmatpush1.msra.mxu0 0.0
  %67 = vmatprep.subr.mxu0 0.0
  %68 = vmatpush1.msra.mxu0 0.0
  %69 = vmatprep.subr.mxu0 0.0
  %70 = vmatpush1.msra.mxu0 %v31
  %71 = vmatprep.subr.mxu0 0.0
  %72 = vmatpush1.msra.mxu0 %v30
  %73 = vmatprep.subr.mxu0 0.0
  %74 = vmatpush1.msra.mxu0 %v29
  %75 = vmatprep.subr.mxu0 0.0
  %76 = vmatpush2.msra.mxu0 0.0
  %77 = vmatprep.subr.mxu0 0.0
  %78 = vmatpush2.msra.mxu0 0.0
  %79 = vmatprep.subr.mxu0 0.0
  %80 = vmatpush2.msra.mxu0 0.0
  %81 = vmatprep.subr.mxu0 0.0
  %82 = vmatpush2.msra.mxu0 0.0
  %83 = vmatprep.subr.mxu0 0.0
  %84 = vmatpush2.msra.mxu0 0.0
  %85 = vmatprep.subr.mxu0 0.0
  %86 = vmatpush2.msra.mxu0 0.0
  %87 = vmatprep.subr.mxu0 0.0
  %88 = vmatpush2.msra.mxu0 0.0
  %89 = vmatprep.subr.mxu0 0.0
  %90 = vmatpush2.msra.mxu0 0.0
  %91 = vmatprep.subr.mxu0 0.0
  %92 = vmatpush2.msra.mxu0 0.0
  %93 = vmatprep.subr.mxu0 0.0
  %94 = vmatpush2.msra.mxu0 0.0
  %95 = vmatprep.subr.mxu0 0.0
  %96 = vmatpush2.msra.mxu0 0.0
  %97 = vmatprep.subr.mxu0 0.0
  %98 = vmatpush2.msra.mxu0 0.0
  %99 = vmatprep.subr.mxu0 0.0
  %100 = vmatpush2.msra.mxu0 0.0
  %101 = vmatprep.subr.mxu0 0.0
  %102 = vmatpush2.msra.mxu0 0.0
  %103 = vmatprep.subr.mxu0 0.0
  %104 = vmatpush2.msra.mxu0 0.0
  %105 = vmatprep.subr.mxu0 0.0
  %106 = vmatpush2.msra.mxu0 0.0
  %107 = vmatprep.mubr.f32.mxu0 0.0
  %108 = vmatmul.mubr.f32.gmra.mxu0 %v41
  %v109 = vpop.f32.mrf.mxu0
  %v110 = vadd.f32 %v37, %v109
  %v111 = vpop.f32.mrf.mxu0
  %112 = vdwg.mxu0
  %vm113 = vcmp.gt.f32.partialorder %v110, 0.0
  %v114 = vmul.f32 %v110, 0.01
  %v115 = vsel %vm113, %v110, %v114
  %v116 = vld [vmem:[%s3] sm:$0xff]
  %v117 = vld [vmem:[%s3 + $0x8] sm:$0xff]
  %v118 = vld [vmem:[%s3 + $0x10] sm:$0xff]
  %v119 = vld [vmem:[%s3 + $0x18] sm:$0xff]
  %v120 = vld [vmem:[%s3 + $0x20] sm:$0xff]
  %v121 = vld [vmem:[%s3 + $0x28] sm:$0xff]
  %v122 = vld [vmem:[%s3 + $0x30] sm:$0xff]
  %v123 = vld [vmem:[%s3 + $0x38] sm:$0xff]
  %v124 = vld [vmem:[%s4] sm:$0x1]
  %v126 = vlaneseq
  %v127 = vshrl.u32 %v126, 7
  %v128 = vsub.s32 0, %v127
  %v129 = vrot.slane %v124, %v128
  %vm131 = vcmask 523264
  %v133 = vsel %vm131, %v115, 0
  %135 = vmatprep.subr.mxu0 0.0
  %136 = vmatpush1.msra.mxu0 0.0
  %137 = vmatprep.subr.mxu0 0.0
  %138 = vmatpush1.msra.mxu0 0.0
  %139 = vmatprep.subr.mxu0 0.0
  %140 = vmatpush1.msra.mxu0 0.0
  %141 = vmatprep.subr.mxu0 0.0
  %142 = vmatpush1.msra.mxu0 0.0
  %143 = vmatprep.subr.mxu0 0.0
  %144 = vmatpush1.msra.mxu0 0.0
  %145 = vmatprep.subr.mxu0 0.0
  %146 = vmatpush1.msra.mxu0 0.0
  %147 = vmatprep.subr.mxu0 0.0
  %148 = vmatpush1.msra.mxu0 0.0
  %149 = vmatprep.subr.mxu0 0.0
  %150 = vmatpush1.msra.mxu0 0.0
  %151 = vmatprep.subr.mxu0 0.0
  %152 = vmatpush1.msra.mxu0 %v123
  %153 = vmatprep.subr.mxu0 0.0
  %154 = vmatpush1.msra.mxu0 %v122
  %155 = vmatprep.subr.mxu0 0.0
  %156 = vmatpush1.msra.mxu0 %v121
  %157 = vmatprep.subr.mxu0 0.0
  %158 = vmatpush1.msra.mxu0 %v120
  %159 = vmatprep.subr.mxu0 0.0
  %160 = vmatpush1.msra.mxu0 %v119
  %161 = vmatprep.subr.mxu0 0.0
  %162 = vmatpush1.msra.mxu0 %v118
  %163 = vmatprep.subr.mxu0 0.0
  %164 = vmatpush1.msra.mxu0 %v117
  %165 = vmatprep.subr.mxu0 0.0
  %166 = vmatpush1.msra.mxu0 %v116
  %167 = vmatprep.subr.mxu0 0.0
  %168 = vmatpush2.msra.mxu0 0.0
  %169 = vmatprep.subr.mxu0 0.0
  %170 = vmatpush2.msra.mxu0 0.0
  %171 = vmatprep.subr.mxu0 0.0
  %172 = vmatpush2.msra.mxu0 0.0
  %173 = vmatprep.subr.mxu0 0.0
  %174 = vmatpush2.msra.mxu0 0.0
  %175 = vmatprep.subr.mxu0 0.0
  %176 = vmatpush2.msra.mxu0 0.0
  %177 = vmatprep.subr.mxu0 0.0
  %178 = vmatpush2.msra.mxu0 0.0
  %179 = vmatprep.subr.mxu0 0.0
  %180 = vmatpush2.msra.mxu0 0.0
  %181 = vmatprep.subr.mxu0 0.0
  %182 = vmatpush2.msra.mxu0 0.0
  %183 = vmatprep.subr.mxu0 0.0
  %184 = vmatpush2.msra.mxu0 0.0
  %185 = vmatprep.subr.mxu0 0.0
  %186 = vmatpush2.msra.mxu0 0.0
  %187 = vmatprep.subr.mxu0 0.0
  %188 = vmatpush2.msra.mxu0 0.0
  %189 = vmatprep.subr.mxu0 0.0
  %190 = vmatpush2.msra.mxu0 0.0
  %191 = vmatprep.subr.mxu0 0.0
  %192 = vmatpush2.msra.mxu0 0.0
  %193 = vmatprep.subr.mxu0 0.0
  %194 = vmatpush2.msra.mxu0 0.0
  %195 = vmatprep.subr.mxu0 0.0
  %196 = vmatpush2.msra.mxu0 0.0
  %197 = vmatprep.subr.mxu0 0.0
  %198 = vmatpush2.msra.mxu0 0.0
  %199 = vmatprep.mubr.f32.mxu0 0.0
  %200 = vmatmul.mubr.f32.gmra.mxu0 %v133
  %v201 = vpop.f32.mrf.mxu0
  %v202 = vadd.f32 %v129, %v201
  %v203 = vpop.f32.mrf.mxu0
  %204 = vdwg.mxu0
  %vm205 = vcmp.gt.f32.partialorder %v202, 0.0
  %v206 = vmul.f32 %v202, 0.01
  %v207 = vsel %vm205, %v202, %v206
  %v208 = vld [vmem:[%s5] sm:$0x1]
  %v210 = vlaneseq
  %v211 = vshrl.u32 %v210, 7
  %v212 = vsub.s32 0, %v211
  %v213 = vrot.slane %v208, %v212
  %v215 = vmul.f32 %v207, %v213
  %vm216 = vcmask 261120
  %v217 = vsel %vm216, %v215, 0.0
  %218 = vadd.xlane.f32.xlu0 %v217
  %v219 = vpop.xlane.xlu0 %218
  %v220 = vld [vmem:[#allocation2] sm:$0x1]
  %v222 = vlaneseq
  %v223 = vshrl.u32 %v222, 7
  %v224 = vsub.s32 0, %v223
  %v225 = vrot.slane %v220, %v224
  %v227 = vadd.f32 %v219, %v225
  %vm228 = vcmask 7168
  %229 = vst.msk [vmem:[%s7] sm:$0xff] %vm228, %v227
  // Predicated region
  $region30: #{tpu_custom_call.1} parent=0 // pred_check
    _
  $region31: #{tpu_custom_call.1} parent=0 // pred_check_branch
    %231 = sbr.rel (0) target = $region33
  $region32: #{tpu_custom_call.1} parent=0 // pred_region
    _
  $region33: #{tpu_custom_call.1} parent=0 // pred_fallthru
    _
  // Predicated region
  $region34: #{tpu_custom_call.1} parent=0 // pred_check
    _
  $region35: #{tpu_custom_call.1} parent=0 // pred_check_branch
    %233 = sbr.rel (0) target = $region37
  $region36: #{tpu_custom_call.1} parent=0 // pred_region
    _
  $region37: #{tpu_custom_call.1} parent=0 // pred_fallthru
    _

</llo_original>
